<compile_context>
chip_gen: v7x
topology: tpu7x:2x2x1
jax: 0.10.0
libtpu: 0.0.40
codegen_flags: <defaults>
</compile_context>

<pallas_src>
import functools

import jax
import jax.numpy as jnp
from jax import lax
from jax.experimental import pallas as pl
from jax.experimental.pallas import tpu as pltpu


def _kernel_linear_act_kernel(x_ref, w_ref, b_ref, o_ref, acc_ref, *, mxu_dtype):
    k = pl.program_id(2)
    nk = pl.num_programs(2)

    @pl.when(k == 0)
    def _():
        acc_ref[...] = jnp.zeros_like(acc_ref)

    # LeakyReLU(negative_slope=0.1) in the input dtype (native f32 VPU path on
    # all generations); cast to the MXU operand dtype only at the dot.
    x = x_ref[...]
    act = jnp.where(x > 0, x, x * 0.1)

    # Contract K against K (trans_b): the MXU handles this layout natively, so
    # the [out_ch, in_ch] PyTorch weight is used as-is (no HBM transpose copy).
    acc_ref[...] += lax.dot_general(
        act.astype(mxu_dtype),
        w_ref[...].astype(mxu_dtype),
        dimension_numbers=(((1,), (1,)), ((), ())),
        preferred_element_type=jnp.float32,
    )

    @pl.when(k == nk - 1)
    def _():
        out = acc_ref[...] + b_ref[...].astype(jnp.float32)
        o_ref[...] = out.astype(o_ref.dtype)


def kernel_linear_act(x, weight, bias, *, tm=512, tn=512, tk=512, mxu_dtype=None):
    """x: [B, in_ch]; weight: [out_ch, in_ch] (PyTorch layout); bias: [out_ch].

    mxu_dtype: operand dtype fed to the MXU (e.g. jnp.bfloat16 on v6e/v7x);
    accumulation is always float32.
    """
    B, in_ch = x.shape
    out_ch, in_ch_w = weight.shape
    assert in_ch_w == in_ch, "weight must be [out_ch, in_ch]"
    if mxu_dtype is None:
        mxu_dtype = x.dtype

    b2 = bias.reshape(1, out_ch)

    # Clamp tiles to the problem; a block equal to the full dim is always legal.
    tm = min(tm, B)
    tn = min(tn, out_ch)
    tk = min(tk, in_ch)
    # K-remainder tiles would feed padding garbage into every valid output
    # element, so only tile K when it divides evenly (M/N remainders are fine:
    # their padded outputs are dropped on store).
    if in_ch % tk != 0:
        tk = in_ch

    nm = pl.cdiv(B, tm)
    nn_ = pl.cdiv(out_ch, tn)
    nk = pl.cdiv(in_ch, tk)

    # v7x has 2 TensorCores: give the parallel axes >= 2 steps when the batch
    # allows so dimension_semantics=("parallel", ...) can actually shard cores.
    if nm * nn_ == 1 and B >= 16 and B % 16 == 0:
        tm = B // 2          # stays a multiple of 8
        nm = 2

    # Rough per-step VMEM budget (double-buffered x/out, weight, bias, f32 acc).
    itemsize = jnp.dtype(x.dtype).itemsize
    w_itemsize = jnp.dtype(weight.dtype).itemsize
    vmem_est = (
        2 * tm * tk * itemsize
        + 2 * tm * tn * itemsize
        + 2 * tn * tk * w_itemsize
        + 2 * tn * w_itemsize
        + tm * tn * 4
    )
    vmem_limit = int(max(32 * 1024 * 1024, min(2 * vmem_est, 56 * 1024 * 1024)))

    kernel = functools.partial(_kernel_linear_act_kernel, mxu_dtype=mxu_dtype)

    def build(single_buffer_consts):
        # Grid-constant weight/bias blocks only need one VMEM buffer: halves the
        # resident weight footprint (headroom for bigger tm, fits v7x's 64 MiB).
        w_kwargs = {}
        b_kwargs = {}
        if single_buffer_consts:
            if nn_ == 1 and nk == 1:
                w_kwargs = dict(pipeline_mode=pl.Buffered(1))
            if nn_ == 1:
                b_kwargs = dict(pipeline_mode=pl.Buffered(1))
        return pl.pallas_call(
            kernel,
            out_shape=jax.ShapeDtypeStruct((B, out_ch), x.dtype),
            grid_spec=pltpu.PrefetchScalarGridSpec(
                num_scalar_prefetch=0,
                grid=(nm, nn_, nk),
                in_specs=[
                    pl.BlockSpec((tm, tk), lambda i, j, k: (i, k)),
                    pl.BlockSpec((tn, tk), lambda i, j, k: (j, k), **w_kwargs),
                    pl.BlockSpec((1, tn), lambda i, j, k: (0, j), **b_kwargs),
                ],
                out_specs=pl.BlockSpec((tm, tn), lambda i, j, k: (i, j)),
                scratch_shapes=[pltpu.VMEM((tm, tn), jnp.float32)],
            ),
            compiler_params=pltpu.CompilerParams(
                dimension_semantics=("parallel", "parallel", "arbitrary"),
                vmem_limit_bytes=vmem_limit,
            ),
        )

    try:
        return build(True)(x, weight, b2)
    except Exception:
        # Fallback if this jax build rejects single-buffered (Buffered(1)) specs.
        return build(False)(x, weight, b2)


if __name__ == "__main__":
    # Deterministic inputs at small shapes (nn.Linear layout: W [out, in], b [out]).
    input_ch, output_ch, batch = 32, 16, 8
    key = jax.random.PRNGKey(0)
    kx, kw, kb = jax.random.split(key, 3)

    bound = 1.0 / (input_ch ** 0.5)
    x = jax.random.normal(kx, (batch, input_ch), dtype=jnp.float32)
    W = jax.random.uniform(kw, (output_ch, input_ch), minval=-bound, maxval=bound,
                           dtype=jnp.float32)
    b = jax.random.uniform(kb, (output_ch,), minval=-bound, maxval=bound,
                           dtype=jnp.float32)

    # Plain-JAX reference (same semantics as the PyTorch module).
    act = jnp.where(x > 0, x, 0.1 * x)
    ref = act @ W.T + b

    # Exact path: f32 MXU operands.
    out = kernel_linear_act(x, W, b)
    jax.block_until_ready(out)
    assert out.shape == (batch, output_ch)
    assert jnp.allclose(out, ref, atol=1e-5, rtol=1e-5)

    # Fast path for v6e/v7x: bf16 MXU operands, f32 accumulation.
    out_bf16 = kernel_linear_act(x, W, b, mxu_dtype=jnp.bfloat16)
    jax.block_until_ready(out_bf16)
    assert jnp.allclose(out_bf16, ref, atol=5e-2, rtol=5e-2)

    print("KERNEL_OK")
</pallas_src>

<mosaic_0001>
module attributes {stable_mosaic.version = 11 : i64} {
  func.func @_kernel_linear_act_kernel(%arg0: i32, %arg1: i32, %arg2: i32, %arg3: memref<8x32xf32, #tpu.memory_space<vmem>>, %arg4: memref<16x32xf32, #tpu.memory_space<vmem>>, %arg5: memref<1x16xf32, #tpu.memory_space<vmem>>, %arg6: memref<8x16xf32, #tpu.memory_space<vmem>>, %arg7: memref<8x16xf32, #tpu.memory_space<vmem>>) attributes {dimension_semantics = [#tpu.dimension_semantics<parallel>, #tpu.dimension_semantics<parallel>, #tpu.dimension_semantics<arbitrary>], iteration_bounds = array<i64: 1, 1, 1>, scalar_prefetch = 0 : i64, scratch_operands = 1 : i64, tpu.core_type = #tpu.core_type<tc>, window_params = [{transform_indices = @transform_0, window_bounds = array<i64: 8, 32>}, {pipeline_mode = #tpu.pipeline_mode<synchronous>, transform_indices = @transform_1, window_bounds = array<i64: 16, 32>}, {pipeline_mode = #tpu.pipeline_mode<synchronous>, transform_indices = @transform_2, window_bounds = array<i64: 1, 16>}, {transform_indices = @transform_3, window_bounds = array<i64: 8, 16>}]} {
    %c0_i32 = arith.constant 0 : i32
    %0 = arith.cmpi eq, %arg2, %c0_i32 : i32
    %1 = arith.extui %0 : i1 to i32
    %c0_i32_0 = arith.constant 0 : i32
    %2 = arith.cmpi ne, %1, %c0_i32_0 : i32
    scf.if %2 {
      %cst_12 = arith.constant 0.000000e+00 : f32
      %17 = vector.broadcast %cst_12 : f32 to vector<8x16xf32>
      %c0_13 = arith.constant 0 : index
      %c0_14 = arith.constant 0 : index
      %18 = vector.load %arg7[%c0_13, %c0_14] : memref<8x16xf32, #tpu.memory_space<vmem>>, vector<8x16xf32>
      tpu.vector_store %arg7[%c0_13, %c0_14], %17 {strides = array<i32>} : memref<8x16xf32, #tpu.memory_space<vmem>>, vector<8x16xf32>,
    } else {
    }
    %c0 = arith.constant 0 : index
    %c0_1 = arith.constant 0 : index
    %3 = vector.load %arg3[%c0, %c0_1] : memref<8x32xf32, #tpu.memory_space<vmem>>, vector<8x32xf32>
    %cst = arith.constant 0.000000e+00 : f32
    %4 = vector.broadcast %cst : f32 to vector<8x32xf32>
    %5 = arith.cmpf ogt, %3, %4 : vector<8x32xf32>
    %cst_2 = arith.constant 1.000000e-01 : f32
    %6 = vector.broadcast %cst_2 : f32 to vector<8x32xf32>
    %7 = arith.mulf %3, %6 : vector<8x32xf32>
    %8 = arith.select %5, %3, %7 : vector<8x32xi1>, vector<8x32xf32>
    %c0_3 = arith.constant 0 : index
    %c0_4 = arith.constant 0 : index
    %9 = vector.load %arg7[%c0_3, %c0_4] : memref<8x16xf32, #tpu.memory_space<vmem>>, vector<8x16xf32>
    %c0_5 = arith.constant 0 : index
    %c0_6 = arith.constant 0 : index
    %10 = vector.load %arg4[%c0_5, %c0_6] : memref<16x32xf32, #tpu.memory_space<vmem>>, vector<16x32xf32>
    %cst_7 = arith.constant dense<0.000000e+00> : vector<8x16xf32>
    %11 = tpu.matmul %8, %10, %cst_7 {dimension_numbers = #tpu.dot_dimension_numbers<[1], [1], [0], [0], [0, 0, 1, 0], [], []>} : vector<8x32xf32>, vector<16x32xf32>, vector<8x16xf32> -> vector<8x16xf32>
    %12 = arith.addf %9, %11 : vector<8x16xf32>
    %c0_8 = arith.constant 0 : index
    %c0_9 = arith.constant 0 : index
    %13 = vector.load %arg7[%c0_8, %c0_9] : memref<8x16xf32, #tpu.memory_space<vmem>>, vector<8x16xf32>
    tpu.vector_store %arg7[%c0_8, %c0_9], %12 {strides = array<i32>} : memref<8x16xf32, #tpu.memory_space<vmem>>, vector<8x16xf32>,
    %c0_i32_10 = arith.constant 0 : i32
    %14 = arith.cmpi eq, %arg2, %c0_i32_10 : i32
    %15 = arith.extui %14 : i1 to i32
    %c0_i32_11 = arith.constant 0 : i32
    %16 = arith.cmpi ne, %15, %c0_i32_11 : i32
    scf.if %16 {
      %c0_12 = arith.constant 0 : index
      %c0_13 = arith.constant 0 : index
      %17 = vector.load %arg7[%c0_12, %c0_13] : memref<8x16xf32, #tpu.memory_space<vmem>>, vector<8x16xf32>
      %c0_14 = arith.constant 0 : index
      %c0_15 = arith.constant 0 : index
      %18 = vector.load %arg5[%c0_14, %c0_15] : memref<1x16xf32, #tpu.memory_space<vmem>>, vector<1x16xf32>
      %19 = vector.broadcast %18 : vector<1x16xf32> to vector<8x16xf32>
      %20 = arith.addf %17, %19 : vector<8x16xf32>
      %c0_16 = arith.constant 0 : index
      %c0_17 = arith.constant 0 : index
      %21 = vector.load %arg6[%c0_16, %c0_17] : memref<8x16xf32, #tpu.memory_space<vmem>>, vector<8x16xf32>
      tpu.vector_store %arg6[%c0_16, %c0_17], %20 {strides = array<i32>} : memref<8x16xf32, #tpu.memory_space<vmem>>, vector<8x16xf32>,
    } else {
    }
    return
  }
  func.func @transform_0(%arg0: i32, %arg1: i32, %arg2: i32) -> (i32, i32) {
    %c0_i32 = arith.constant 0 : i32
    return %arg0, %arg2 : i32, i32
  }
  func.func @transform_1(%arg0: i32, %arg1: i32, %arg2: i32) -> (i32, i32) {
    %c0_i32 = arith.constant 0 : i32
    return %arg1, %arg2 : i32, i32
  }
  func.func @transform_2(%arg0: i32, %arg1: i32, %arg2: i32) -> (i32, i32) {
    %c0_i32 = arith.constant 0 : i32
    %c0_i32_0 = arith.constant 0 : i32
    return %c0_i32, %arg1 : i32, i32
  }
  func.func @transform_3(%arg0: i32, %arg1: i32, %arg2: i32) -> (i32, i32) {
    %c0_i32 = arith.constant 0 : i32
    return %arg0, %arg1 : i32, i32
  }
}

module attributes {stable_mosaic.version = 11 : i64} {
  func.func @_kernel_linear_act_kernel(%arg0: i32, %arg1: i32, %arg2: i32, %arg3: memref<8x32xf32, #tpu.memory_space<vmem>>, %arg4: memref<16x32xf32, #tpu.memory_space<vmem>>, %arg5: memref<1x16xf32, #tpu.memory_space<vmem>>, %arg6: memref<8x16xf32, #tpu.memory_space<vmem>>, %arg7: memref<8x16xf32, #tpu.memory_space<vmem>>) attributes {dimension_semantics = [#tpu.dimension_semantics<parallel>, #tpu.dimension_semantics<parallel>, #tpu.dimension_semantics<arbitrary>], iteration_bounds = array<i64: 1, 1, 1>, scalar_prefetch = 0 : i64, scratch_operands = 1 : i64, tpu.core_type = #tpu.core_type<tc>, window_params = [{transform_indices = @transform_0, window_bounds = array<i64: 8, 32>}, {transform_indices = @transform_1, window_bounds = array<i64: 16, 32>}, {transform_indices = @transform_2, window_bounds = array<i64: 1, 16>}, {transform_indices = @transform_3, window_bounds = array<i64: 8, 16>}]} {
    %c0_i32 = arith.constant 0 : i32
    %0 = arith.cmpi eq, %arg2, %c0_i32 : i32
    %1 = arith.extui %0 : i1 to i32
    %c0_i32_0 = arith.constant 0 : i32
    %2 = arith.cmpi ne, %1, %c0_i32_0 : i32
    scf.if %2 {
      %cst_12 = arith.constant 0.000000e+00 : f32
      %17 = vector.broadcast %cst_12 : f32 to vector<8x16xf32>
      %c0_13 = arith.constant 0 : index
      %c0_14 = arith.constant 0 : index
      %18 = vector.load %arg7[%c0_13, %c0_14] : memref<8x16xf32, #tpu.memory_space<vmem>>, vector<8x16xf32>
      tpu.vector_store %arg7[%c0_13, %c0_14], %17 {strides = array<i32>} : memref<8x16xf32, #tpu.memory_space<vmem>>, vector<8x16xf32>,
    } else {
    }
    %c0 = arith.constant 0 : index
    %c0_1 = arith.constant 0 : index
    %3 = vector.load %arg3[%c0, %c0_1] : memref<8x32xf32, #tpu.memory_space<vmem>>, vector<8x32xf32>
    %cst = arith.constant 0.000000e+00 : f32
    %4 = vector.broadcast %cst : f32 to vector<8x32xf32>
    %5 = arith.cmpf ogt, %3, %4 : vector<8x32xf32>
    %cst_2 = arith.constant 1.000000e-01 : f32
    %6 = vector.broadcast %cst_2 : f32 to vector<8x32xf32>
    %7 = arith.mulf %3, %6 : vector<8x32xf32>
    %8 = arith.select %5, %3, %7 : vector<8x32xi1>, vector<8x32xf32>
    %c0_3 = arith.constant 0 : index
    %c0_4 = arith.constant 0 : index
    %9 = vector.load %arg7[%c0_3, %c0_4] : memref<8x16xf32, #tpu.memory_space<vmem>>, vector<8x16xf32>
    %c0_5 = arith.constant 0 : index
    %c0_6 = arith.constant 0 : index
    %10 = vector.load %arg4[%c0_5, %c0_6] : memref<16x32xf32, #tpu.memory_space<vmem>>, vector<16x32xf32>
    %cst_7 = arith.constant dense<0.000000e+00> : vector<8x16xf32>
    %11 = tpu.matmul %8, %10, %cst_7 {dimension_numbers = #tpu.dot_dimension_numbers<[1], [1], [0], [0], [0, 0, 1, 0], [], []>} : vector<8x32xf32>, vector<16x32xf32>, vector<8x16xf32> -> vector<8x16xf32>
    %12 = arith.addf %9, %11 : vector<8x16xf32>
    %c0_8 = arith.constant 0 : index
    %c0_9 = arith.constant 0 : index
    %13 = vector.load %arg7[%c0_8, %c0_9] : memref<8x16xf32, #tpu.memory_space<vmem>>, vector<8x16xf32>
    tpu.vector_store %arg7[%c0_8, %c0_9], %12 {strides = array<i32>} : memref<8x16xf32, #tpu.memory_space<vmem>>, vector<8x16xf32>,
    %c0_i32_10 = arith.constant 0 : i32
    %14 = arith.cmpi eq, %arg2, %c0_i32_10 : i32
    %15 = arith.extui %14 : i1 to i32
    %c0_i32_11 = arith.constant 0 : i32
    %16 = arith.cmpi ne, %15, %c0_i32_11 : i32
    scf.if %16 {
      %c0_12 = arith.constant 0 : index
      %c0_13 = arith.constant 0 : index
      %17 = vector.load %arg7[%c0_12, %c0_13] : memref<8x16xf32, #tpu.memory_space<vmem>>, vector<8x16xf32>
      %c0_14 = arith.constant 0 : index
      %c0_15 = arith.constant 0 : index
      %18 = vector.load %arg5[%c0_14, %c0_15] : memref<1x16xf32, #tpu.memory_space<vmem>>, vector<1x16xf32>
      %19 = vector.broadcast %18 : vector<1x16xf32> to vector<8x16xf32>
      %20 = arith.addf %17, %19 : vector<8x16xf32>
      %c0_16 = arith.constant 0 : index
      %c0_17 = arith.constant 0 : index
      %21 = vector.load %arg6[%c0_16, %c0_17] : memref<8x16xf32, #tpu.memory_space<vmem>>, vector<8x16xf32>
      tpu.vector_store %arg6[%c0_16, %c0_17], %20 {strides = array<i32>} : memref<8x16xf32, #tpu.memory_space<vmem>>, vector<8x16xf32>,
    } else {
    }
    return
  }
  func.func @transform_0(%arg0: i32, %arg1: i32, %arg2: i32) -> (i32, i32) {
    %c0_i32 = arith.constant 0 : i32
    return %arg0, %arg2 : i32, i32
  }
  func.func @transform_1(%arg0: i32, %arg1: i32, %arg2: i32) -> (i32, i32) {
    %c0_i32 = arith.constant 0 : i32
    return %arg1, %arg2 : i32, i32
  }
  func.func @transform_2(%arg0: i32, %arg1: i32, %arg2: i32) -> (i32, i32) {
    %c0_i32 = arith.constant 0 : i32
    %c0_i32_0 = arith.constant 0 : i32
    return %c0_i32, %arg1 : i32, i32
  }
  func.func @transform_3(%arg0: i32, %arg1: i32, %arg2: i32) -> (i32, i32) {
    %c0_i32 = arith.constant 0 : i32
    return %arg0, %arg1 : i32, i32
  }
}

</mosaic_0001>

<llo_original>
// kernel: tpu_custom_call.1
$region0: #{tpu_custom_call.1}
  #allocation0 [shape = 'u32[]', space=smem, size = 0x4, offset = 0x4, fixed_abs, tag = 'smem constant byte address 0x4 - core index']
  #allocation1 [shape = 'u32[144,128]{1,0:T(1,128)}', space=vmem, size = 0x12000, scoped, tag = 'internal scratch']
  #allocation2 [shape = 'f32[8,16]{1,0:T(8,128)}', space=vmem, size = 0x1000, scoped, tag = 'scratch operand']
  %s0 = inlined_call_operand.hbm [shape: f32[8,32], index: 0, kind: input, shape index: {}]
  %s1 = inlined_call_operand.hbm [shape: f32[16,32], index: 1, kind: input, shape index: {}]
  %s2 = inlined_call_operand.vmem [shape: f32[1,16], index: 2, kind: input, shape index: {}]
  %s3 = inlined_call_operand.hbm [shape: f32[8,16], index: 3, kind: output, shape index: {}]
  %s4 = sld [smem:[#allocation0]]
  $region38: #{tpu_custom_call.1} parent=0
    _
  %s6 = ssub.s32 1, %s4
  %s7 = scalar_select 0, %s6, %s4
  $region1: #{tpu_custom_call.1} parent=0
    #allocation3 [shape = 'u8[4096]{0}', space=vmem, size = 0x1000, scoped, tag = 'input window, operand 0, single buffered']
    #allocation4 [shape = 's32[1]{0}', space=sflag, size = 0x4, scoped, tag = 'scoped memory for tpu_custom_call.1']
    #allocation5 [shape = 's32[1]{0}', space=sflag, size = 0x4, scoped, tag = 'scoped memory for tpu_custom_call.1']
    #allocation6 [shape = 'u8[8192]{0}', space=vmem, size = 0x2000, scoped, tag = 'input window, operand 1, single buffered']
    #allocation7 [shape = 's32[1]{0}', space=sflag, size = 0x4, scoped, tag = 'scoped memory for tpu_custom_call.1']
    #allocation8 [shape = 'u8[4096]{0}', space=vmem, size = 0x1000, scoped, tag = 'output window, operand 0, single buffered']
    %8 = vsyncpa [#allocation4], 0
    %9 = vsyncpa [#allocation7], 0
    %10 = vsyncpa [#allocation5], 0
    // Predicated region
    $region2: #{tpu_custom_call.1} parent=1 // pred_check
      _
    $region3: #{tpu_custom_call.1} parent=1 // pred_check_branch
      %12 = sbr.rel (0) target = $region5
    $region4: #{tpu_custom_call.1} parent=1 // pred_region
      %s14 = ssub.s32 128, 128
      %15 = vsyncadd [#allocation4], %s14
      %s17 = sshll.u32 [#allocation3], 4
      %s18 = int_to_ptr.vmem [resolvable:$true] %s17
      %20 = dma.hbm_to_vmem [thread:$0]  %s0, 128, %s18, [#allocation4]
    $region5: #{tpu_custom_call.1} parent=1 // pred_fallthru
      _
    // Predicated region
    $region6: #{tpu_custom_call.1} parent=1 // pred_check
      _
    $region7: #{tpu_custom_call.1} parent=1 // pred_check_branch
      %22 = sbr.rel (0) target = $region9
    $region8: #{tpu_custom_call.1} parent=1 // pred_region
      %s24 = ssub.s32 256, 256
      %25 = vsyncadd [#allocation7], %s24
      %s26 = sshll.u32 [#allocation6], 4
      %s27 = int_to_ptr.vmem [resolvable:$true] %s26
      %32 = dma.hbm_to_vmem [thread:$0]  %s1, 256, %s27, [#allocation7], 128, 128, 8
    $region9: #{tpu_custom_call.1} parent=1 // pred_fallthru
      _
    // Predicated region
    $region10: #{tpu_custom_call.1} parent=1 // pred_check
      _
    $region11: #{tpu_custom_call.1} parent=1 // pred_check_branch
      %34 = sbr.rel (0) target = $region13
    $region12: #{tpu_custom_call.1} parent=1 // pred_region
      _
    $region13: #{tpu_custom_call.1} parent=1 // pred_fallthru
      _
    // Predicated region
    $region14: #{tpu_custom_call.1} parent=1 // pred_check
      _
    $region15: #{tpu_custom_call.1} parent=1 // pred_check_branch
      %36 = sbr.rel (0) target = $region17
    $region16: #{tpu_custom_call.1} parent=1 // pred_region
      %37 = dma.done [#allocation4], 128
    $region17: #{tpu_custom_call.1} parent=1 // pred_fallthru
      _
    // Predicated region
    $region18: #{tpu_custom_call.1} parent=1 // pred_check
      _
    $region19: #{tpu_custom_call.1} parent=1 // pred_check_branch
      %39 = sbr.rel (0) target = $region21
    $region20: #{tpu_custom_call.1} parent=1 // pred_region
      %40 = dma.done [#allocation7], 256
    $region21: #{tpu_custom_call.1} parent=1 // pred_fallthru
      _
    %p41 = scmp.eq.s32.totalorder 0, 0
    // Predicated region
    $region22: #{tpu_custom_call.1} parent=1 // pred_check
      %p42 = pneg %p41
    $region23: #{tpu_custom_call.1} parent=1 // pred_check_branch
      %44 = sbr.rel (%p42) target = $region25
    $region24: #{tpu_custom_call.1} parent=1 // pred_region
      %vm45 = vcmask 130048
      %46 = vst.msk [vmem:[#allocation2] sm:$0xff] %vm45, 0.0
    $region25: #{tpu_custom_call.1} parent=1 // pred_fallthru
      _
    %v47 = vld [vmem:[#allocation3] sm:$0xff]
    %vm48 = vcmp.gt.f32.partialorder %v47, 0.0
    %v49 = vmul.f32 %v47, 0.1
    %v50 = vsel %vm48, %v47, %v49
    %v51 = vld [vmem:[#allocation2] sm:$0xff]
    %v52 = vld [vmem:[#allocation6] sm:$0xff]
    %v53 = vld [vmem:[#allocation6 + $0x8] sm:$0xff]
    %vm54 = vcmask 261120
    %v56 = vsel %vm54, %v50, 0
    %v59 = vsel %vm54, %v52, 0
    %v62 = vsel %vm54, %v53, 0
    %64 = vmatprep.subr.mxu0 0.0
    %65 = vmatpush1.xpose.msra.mxu0 %v59
    %66 = vmatprep.subr.mxu0 0.0
    %67 = vmatpush1.xpose.msra.mxu0 %v62
    %68 = vmatprep.subr.mxu0 0.0
    %69 = vmatpush1.xpose.msra.mxu0 0.0
    %70 = vmatprep.subr.mxu0 0.0
    %71 = vmatpush1.xpose.msra.mxu0 0.0
    %72 = vmatprep.subr.mxu0 0.0
    %73 = vmatpush1.xpose.msra.mxu0 0.0
    %74 = vmatprep.subr.mxu0 0.0
    %75 = vmatpush1.xpose.msra.mxu0 0.0
    %76 = vmatprep.subr.mxu0 0.0
    %77 = vmatpush1.xpose.msra.mxu0 0.0
    %78 = vmatprep.subr.mxu0 0.0
    %79 = vmatpush1.xpose.msra.mxu0 0.0
    %80 = vmatprep.subr.mxu0 0.0
    %81 = vmatpush1.xpose.msra.mxu0 0.0
    %82 = vmatprep.subr.mxu0 0.0
    %83 = vmatpush1.xpose.msra.mxu0 0.0
    %84 = vmatprep.subr.mxu0 0.0
    %85 = vmatpush1.xpose.msra.mxu0 0.0
    %86 = vmatprep.subr.mxu0 0.0
    %87 = vmatpush1.xpose.msra.mxu0 0.0
    %88 = vmatprep.subr.mxu0 0.0
    %89 = vmatpush1.xpose.msra.mxu0 0.0
    %90 = vmatprep.subr.mxu0 0.0
    %91 = vmatpush1.xpose.msra.mxu0 0.0
    %92 = vmatprep.subr.mxu0 0.0
    %93 = vmatpush1.xpose.msra.mxu0 0.0
    %94 = vmatprep.subr.mxu0 0.0
    %95 = vmatpush1.xpose.msra.mxu0 0.0
    %96 = vmatprep.subr.mxu0 0.0
    %97 = vmatpush1.xpose.msra.mxu0 0.0
    %98 = vmatprep.subr.mxu0 0.0
    %99 = vmatpush1.xpose.msra.mxu0 0.0
    %100 = vmatprep.subr.mxu0 0.0
    %101 = vmatpush1.xpose.msra.mxu0 0.0
    %102 = vmatprep.subr.mxu0 0.0
    %103 = vmatpush1.xpose.msra.mxu0 0.0
    %104 = vmatprep.subr.mxu0 0.0
    %105 = vmatpush1.xpose.msra.mxu0 0.0
    %106 = vmatprep.subr.mxu0 0.0
    %107 = vmatpush1.xpose.msra.mxu0 0.0
    %108 = vmatprep.subr.mxu0 0.0
    %109 = vmatpush1.xpose.msra.mxu0 0.0
    %110 = vmatprep.subr.mxu0 0.0
    %111 = vmatpush1.xpose.msra.mxu0 0.0
    %112 = vmatprep.subr.mxu0 0.0
    %113 = vmatpush1.xpose.msra.mxu0 0.0
    %114 = vmatprep.subr.mxu0 0.0
    %115 = vmatpush1.xpose.msra.mxu0 0.0
    %116 = vmatprep.subr.mxu0 0.0
    %117 = vmatpush1.xpose.msra.mxu0 0.0
    %118 = vmatprep.subr.mxu0 0.0
    %119 = vmatpush1.xpose.msra.mxu0 0.0
    %120 = vmatprep.subr.mxu0 0.0
    %121 = vmatpush1.xpose.msra.mxu0 0.0
    %122 = vmatprep.subr.mxu0 0.0
    %123 = vmatpush1.xpose.msra.mxu0 0.0
    %124 = vmatprep.subr.mxu0 0.0
    %125 = vmatpush1.xpose.msra.mxu0 0.0
    %126 = vmatprep.subr.mxu0 0.0
    %127 = vmatpush1.xpose.msra.mxu0 0.0
    %128 = vmatprep.mubr.f32.mxu0 0.0
    %129 = vmatmul.mubr.f32.gmra.mrb[0].mxu0 %v56
    %v130 = vpop.f32.mrb[0].mxu0
    %v131 = vadd.f32 0.0, %v130
    %v132 = vpop.f32.mrb[0].mxu0
    %133 = vdwg.mxu0
    %v134 = vadd.f32 %v51, %v131
    %vm135 = vcmask 130048
    %136 = vst.msk [vmem:[#allocation2] sm:$0xff] %vm135, %v134
    // Predicated region
    $region26: #{tpu_custom_call.1} parent=1 // pred_check
      %p137 = pneg %p41
    $region27: #{tpu_custom_call.1} parent=1 // pred_check_branch
      %139 = sbr.rel (%p137) target = $region29
    $region28: #{tpu_custom_call.1} parent=1 // pred_region
      %v140 = vld [vmem:[#allocation2] sm:$0xff]
      %v141 = vld [vmem:[%s2] sm:$0x1]
      %v143 = vlaneseq
      %v144 = vshrl.u32 %v143, 7
      %v145 = vsub.s32 0, %v144
      %v146 = vrot.slane %v141, %v145
      %v148 = vadd.f32 %v140, %v146
      %149 = vst.msk [vmem:[#allocation8] sm:$0xff] %vm135, %v148
    $region29: #{tpu_custom_call.1} parent=1 // pred_fallthru
      _
    // Predicated region
    $region30: #{tpu_custom_call.1} parent=1 // pred_check
      _
    $region31: #{tpu_custom_call.1} parent=1 // pred_check_branch
      %151 = sbr.rel (0) target = $region33
    $region32: #{tpu_custom_call.1} parent=1 // pred_region
      %s153 = ssub.s32 128, 128
      %154 = vsyncadd [#allocation5], %s153
      %s156 = sshll.u32 [#allocation8], 4
      %s157 = int_to_ptr.vmem [resolvable:$true] %s156
      %159 = dma.vmem_to_hbm [thread:$0]  %s157, 128, %s3, [#allocation5]
    $region33: #{tpu_custom_call.1} parent=1 // pred_fallthru
      _
    // Predicated region
    $region34: #{tpu_custom_call.1} parent=1 // pred_check
      _
    $region35: #{tpu_custom_call.1} parent=1 // pred_check_branch
      %161 = sbr.rel (0) target = $region37
    $region36: #{tpu_custom_call.1} parent=1 // pred_region
      %162 = dma.done [#allocation5], 128
    $region37: #{tpu_custom_call.1} parent=1 // pred_fallthru
      _
    %163 = vsyncpa [#allocation4], 1
    %164 = vsyncpa [#allocation7], 1
    %165 = vsyncpa [#allocation5], 1

// kernel: tpu_custom_call.1
$region0: #{tpu_custom_call.1}
  #allocation0 [shape = 'u32[]', space=smem, size = 0x4, offset = 0x4, fixed_abs, tag = 'smem constant byte address 0x4 - core index']
  #allocation1 [shape = 'u32[144,128]{1,0:T(1,128)}', space=vmem, size = 0x12000, scoped, tag = 'internal scratch']
  #allocation2 [shape = 'f32[8,16]{1,0:T(8,128)}', space=vmem, size = 0x1000, scoped, tag = 'scratch operand']
  %s0 = inlined_call_operand.hbm [shape: f32[8,32], index: 0, kind: input, shape index: {}]
  %s1 = inlined_call_operand.hbm [shape: f32[16,32], index: 1, kind: input, shape index: {}]
  %s2 = inlined_call_operand.vmem [shape: f32[1,16], index: 2, kind: input, shape index: {}]
  %s3 = inlined_call_operand.hbm [shape: f32[8,16], index: 3, kind: output, shape index: {}]
  %s4 = sld [smem:[#allocation0]]
  $region38: #{tpu_custom_call.1} parent=0
    _
  %s6 = ssub.s32 1, %s4
  %s7 = scalar_select 0, %s6, %s4
  $region1: #{tpu_custom_call.1} parent=0
    #allocation3 [shape = 'u8[4096]{0}', space=vmem, size = 0x1000, scoped, tag = 'input window, operand 0, single buffered']
    #allocation4 [shape = 's32[1]{0}', space=sflag, size = 0x4, scoped, tag = 'scoped memory for tpu_custom_call.1']
    #allocation5 [shape = 's32[1]{0}', space=sflag, size = 0x4, scoped, tag = 'scoped memory for tpu_custom_call.1']
    #allocation6 [shape = 'u8[8192]{0}', space=vmem, size = 0x2000, scoped, tag = 'input window, operand 1, single buffered']
    #allocation7 [shape = 's32[1]{0}', space=sflag, size = 0x4, scoped, tag = 'scoped memory for tpu_custom_call.1']
    #allocation8 [shape = 'u8[4096]{0}', space=vmem, size = 0x1000, scoped, tag = 'output window, operand 0, single buffered']
    %8 = vsyncpa [#allocation4], 0
    %9 = vsyncpa [#allocation7], 0
    %10 = vsyncpa [#allocation5], 0
    // Predicated region
    $region2: #{tpu_custom_call.1} parent=1 // pred_check
      _
    $region3: #{tpu_custom_call.1} parent=1 // pred_check_branch
      %12 = sbr.rel (0) target = $region5
    $region4: #{tpu_custom_call.1} parent=1 // pred_region
      %s14 = ssub.s32 128, 128
      %15 = vsyncadd [#allocation4], %s14
      %s17 = sshll.u32 [#allocation3], 4
      %s18 = int_to_ptr.vmem [resolvable:$true] %s17
      %20 = dma.hbm_to_vmem [thread:$0]  %s0, 128, %s18, [#allocation4]
    $region5: #{tpu_custom_call.1} parent=1 // pred_fallthru
      _
    // Predicated region
    $region6: #{tpu_custom_call.1} parent=1 // pred_check
      _
    $region7: #{tpu_custom_call.1} parent=1 // pred_check_branch
      %22 = sbr.rel (0) target = $region9
    $region8: #{tpu_custom_call.1} parent=1 // pred_region
      %s24 = ssub.s32 256, 256
      %25 = vsyncadd [#allocation7], %s24
      %s26 = sshll.u32 [#allocation6], 4
      %s27 = int_to_ptr.vmem [resolvable:$true] %s26
      %32 = dma.hbm_to_vmem [thread:$0]  %s1, 256, %s27, [#allocation7], 128, 128, 8
    $region9: #{tpu_custom_call.1} parent=1 // pred_fallthru
      _
    // Predicated region
    $region10: #{tpu_custom_call.1} parent=1 // pred_check
      _
    $region11: #{tpu_custom_call.1} parent=1 // pred_check_branch
      %34 = sbr.rel (0) target = $region13
    $region12: #{tpu_custom_call.1} parent=1 // pred_region
      _
    $region13: #{tpu_custom_call.1} parent=1 // pred_fallthru
      _
    // Predicated region
    $region14: #{tpu_custom_call.1} parent=1 // pred_check
      _
    $region15: #{tpu_custom_call.1} parent=1 // pred_check_branch
      %36 = sbr.rel (0) target = $region17
    $region16: #{tpu_custom_call.1} parent=1 // pred_region
      %37 = dma.done [#allocation4], 128
    $region17: #{tpu_custom_call.1} parent=1 // pred_fallthru
      _
    // Predicated region
    $region18: #{tpu_custom_call.1} parent=1 // pred_check
      _
    $region19: #{tpu_custom_call.1} parent=1 // pred_check_branch
      %39 = sbr.rel (0) target = $region21
    $region20: #{tpu_custom_call.1} parent=1 // pred_region
      %40 = dma.done [#allocation7], 256
    $region21: #{tpu_custom_call.1} parent=1 // pred_fallthru
      _
    %p41 = scmp.eq.s32.totalorder 0, 0
    // Predicated region
    $region22: #{tpu_custom_call.1} parent=1 // pred_check
      %p42 = pneg %p41
    $region23: #{tpu_custom_call.1} parent=1 // pred_check_branch
      %44 = sbr.rel (%p42) target = $region25
    $region24: #{tpu_custom_call.1} parent=1 // pred_region
      %vm45 = vcmask 130048
      %46 = vst.msk [vmem:[#allocation2] sm:$0xff] %vm45, 0.0
    $region25: #{tpu_custom_call.1} parent=1 // pred_fallthru
      _
    %v47 = vld [vmem:[#allocation3] sm:$0xff]
    %vm48 = vcmp.gt.f32.partialorder %v47, 0.0
    %v49 = vmul.f32 %v47, 0.1
    %v50 = vsel %vm48, %v47, %v49
    %v51 = vld [vmem:[#allocation2] sm:$0xff]
    %v52 = vld [vmem:[#allocation6] sm:$0xff]
    %v53 = vld [vmem:[#allocation6 + $0x8] sm:$0xff]
    %vm54 = vcmask 261120
    %v56 = vsel %vm54, %v50, 0
    %v59 = vsel %vm54, %v52, 0
    %v62 = vsel %vm54, %v53, 0
    %64 = vmatprep.subr.mxu0 0.0
    %65 = vmatpush1.xpose.msra.mxu0 %v59
    %66 = vmatprep.subr.mxu0 0.0
    %67 = vmatpush1.xpose.msra.mxu0 %v62
    %68 = vmatprep.subr.mxu0 0.0
    %69 = vmatpush1.xpose.msra.mxu0 0.0
    %70 = vmatprep.subr.mxu0 0.0
    %71 = vmatpush1.xpose.msra.mxu0 0.0
    %72 = vmatprep.subr.mxu0 0.0
    %73 = vmatpush1.xpose.msra.mxu0 0.0
    %74 = vmatprep.subr.mxu0 0.0
    %75 = vmatpush1.xpose.msra.mxu0 0.0
    %76 = vmatprep.subr.mxu0 0.0
    %77 = vmatpush1.xpose.msra.mxu0 0.0
    %78 = vmatprep.subr.mxu0 0.0
    %79 = vmatpush1.xpose.msra.mxu0 0.0
    %80 = vmatprep.subr.mxu0 0.0
    %81 = vmatpush1.xpose.msra.mxu0 0.0
    %82 = vmatprep.subr.mxu0 0.0
    %83 = vmatpush1.xpose.msra.mxu0 0.0
    %84 = vmatprep.subr.mxu0 0.0
    %85 = vmatpush1.xpose.msra.mxu0 0.0
    %86 = vmatprep.subr.mxu0 0.0
    %87 = vmatpush1.xpose.msra.mxu0 0.0
    %88 = vmatprep.subr.mxu0 0.0
    %89 = vmatpush1.xpose.msra.mxu0 0.0
    %90 = vmatprep.subr.mxu0 0.0
    %91 = vmatpush1.xpose.msra.mxu0 0.0
    %92 = vmatprep.subr.mxu0 0.0
    %93 = vmatpush1.xpose.msra.mxu0 0.0
    %94 = vmatprep.subr.mxu0 0.0
    %95 = vmatpush1.xpose.msra.mxu0 0.0
    %96 = vmatprep.subr.mxu0 0.0
    %97 = vmatpush1.xpose.msra.mxu0 0.0
    %98 = vmatprep.subr.mxu0 0.0
    %99 = vmatpush1.xpose.msra.mxu0 0.0
    %100 = vmatprep.subr.mxu0 0.0
    %101 = vmatpush1.xpose.msra.mxu0 0.0
    %102 = vmatprep.subr.mxu0 0.0
    %103 = vmatpush1.xpose.msra.mxu0 0.0
    %104 = vmatprep.subr.mxu0 0.0
    %105 = vmatpush1.xpose.msra.mxu0 0.0
    %106 = vmatprep.subr.mxu0 0.0
    %107 = vmatpush1.xpose.msra.mxu0 0.0
    %108 = vmatprep.subr.mxu0 0.0
    %109 = vmatpush1.xpose.msra.mxu0 0.0
    %110 = vmatprep.subr.mxu0 0.0
    %111 = vmatpush1.xpose.msra.mxu0 0.0
    %112 = vmatprep.subr.mxu0 0.0
    %113 = vmatpush1.xpose.msra.mxu0 0.0
    %114 = vmatprep.subr.mxu0 0.0
    %115 = vmatpush1.xpose.msra.mxu0 0.0
    %116 = vmatprep.subr.mxu0 0.0
    %117 = vmatpush1.xpose.msra.mxu0 0.0
    %118 = vmatprep.subr.mxu0 0.0
    %119 = vmatpush1.xpose.msra.mxu0 0.0
    %120 = vmatprep.subr.mxu0 0.0
    %121 = vmatpush1.xpose.msra.mxu0 0.0
    %122 = vmatprep.subr.mxu0 0.0
    %123 = vmatpush1.xpose.msra.mxu0 0.0
    %124 = vmatprep.subr.mxu0 0.0
    %125 = vmatpush1.xpose.msra.mxu0 0.0
    %126 = vmatprep.subr.mxu0 0.0
    %127 = vmatpush1.xpose.msra.mxu0 0.0
    %128 = vmatprep.mubr.f32.mxu0 0.0
    %129 = vmatmul.mubr.f32.gmra.mrb[0].mxu0 %v56
    %v130 = vpop.f32.mrb[0].mxu0
    %v131 = vadd.f32 0.0, %v130
    %v132 = vpop.f32.mrb[0].mxu0
    %133 = vdwg.mxu0
    %v134 = vadd.f32 %v51, %v131
    %vm135 = vcmask 130048
    %136 = vst.msk [vmem:[#allocation2] sm:$0xff] %vm135, %v134
    // Predicated region
    $region26: #{tpu_custom_call.1} parent=1 // pred_check
      %p137 = pneg %p41
    $region27: #{tpu_custom_call.1} parent=1 // pred_check_branch
      %139 = sbr.rel (%p137) target = $region29
    $region28: #{tpu_custom_call.1} parent=1 // pred_region
      %v140 = vld [vmem:[#allocation2] sm:$0xff]
      %v141 = vld [vmem:[%s2] sm:$0x1]
      %v143 = vlaneseq
      %v144 = vshrl.u32 %v143, 7
      %v145 = vsub.s32 0, %v144
      %v146 = vrot.slane %v141, %v145
      %v148 = vadd.f32 %v140, %v146
      %149 = vst.msk [vmem:[#allocation8] sm:$0xff] %vm135, %v148
    $region29: #{tpu_custom_call.1} parent=1 // pred_fallthru
      _
    // Predicated region
    $region30: #{tpu_custom_call.1} parent=1 // pred_check
      _
    $region31: #{tpu_custom_call.1} parent=1 // pred_check_branch
      %151 = sbr.rel (0) target = $region33
    $region32: #{tpu_custom_call.1} parent=1 // pred_region
      %s153 = ssub.s32 128, 128
      %154 = vsyncadd [#allocation5], %s153
      %s156 = sshll.u32 [#allocation8], 4
      %s157 = int_to_ptr.vmem [resolvable:$true] %s156
      %159 = dma.vmem_to_hbm [thread:$0]  %s157, 128, %s3, [#allocation5]
    $region33: #{tpu_custom_call.1} parent=1 // pred_fallthru
      _
    // Predicated region
    $region34: #{tpu_custom_call.1} parent=1 // pred_check
      _
    $region35: #{tpu_custom_call.1} parent=1 // pred_check_branch
      %161 = sbr.rel (0) target = $region37
    $region36: #{tpu_custom_call.1} parent=1 // pred_region
      %162 = dma.done [#allocation5], 128
    $region37: #{tpu_custom_call.1} parent=1 // pred_fallthru
      _
    %163 = vsyncpa [#allocation4], 1
    %164 = vsyncpa [#allocation7], 1
    %165 = vsyncpa [#allocation5], 1

</llo_original>
